<compile_context>
chip_gen: v6e
topology: v6e:2x2x1
jax: 0.10.0
libtpu: 0.0.40
codegen_flags: <defaults>
</compile_context>

<pallas_src>
import functools

import jax
import jax.numpy as jnp
from jax.experimental import pallas as pl
from jax.experimental.pallas import tpu as pltpu


def decoder_kernel(z_ref, w1_ref, b1_ref, w2_ref, b2_ref, w3_ref, b3_ref,
                   o_ref, *, precision):
    # Batch-major layout: activations are [batch_tile, features]; weights are
    # resident in VMEM (constant index_maps) stored [in, out]; biases [1, out].
    cdt = w1_ref.dtype                               # MXU operand dtype (bf16 default)
    zb = z_ref[...].astype(cdt)                      # in-kernel cast: no extra HBM pass
    h1 = jnp.dot(zb, w1_ref[...],
                 preferred_element_type=jnp.float32, precision=precision)
    h1 = jnp.maximum(h1 + b1_ref[...], 0.0)          # [T, 64]  f32
    h2 = jnp.dot(h1.astype(cdt), w2_ref[...],
                 preferred_element_type=jnp.float32, precision=precision)
    h2 = jnp.maximum(h2 + b2_ref[...], 0.0)          # [T, 128] f32
    out = jnp.dot(h2.astype(cdt), w3_ref[...],
                  preferred_element_type=jnp.float32, precision=precision)
    out = out + b3_ref[...]                          # [T, out_dim] f32
    o_ref[...] = out.astype(o_ref.dtype)


def _choose_batch_tile(b_pad, cap=8192):
    """Pick the batch (sublane) tile.

    Small batches: one grid step (nothing to overlap; avoids ~0.35us/step
    overhead). Large batches: the biggest tile under `cap`, balanced across
    steps, rounded to a sublane multiple. At tile=8192 the f32 intermediates
    (h1+h2 ~ 6 MiB) plus double-buffered I/O stay well under the 32 MiB scoped
    VMEM budget (the tightest, on v7x).
    """
    if b_pad <= cap:
        return b_pad
    steps = -(-b_pad // cap)               # ceil division
    tile = -(-b_pad // steps)
    return ((tile + 7) // 8) * 8           # sublane multiple


def decoder_forward(z, params, *, batch_tile=None, compute_dtype=jnp.bfloat16,
                    out_dtype=None, precision=None, core_parallel=False):
    """Fused decoder MLP forward pass.

    z:       [B, latent_dim]
    params:  dict with w1 [latent,64], b1 [1,64], w2 [64,128], b2 [1,128],
             w3 [128,out], b3 [1,out]   (weights stored [in, out])
    Returns  [B, out_dim] in `out_dtype` (defaults to z.dtype).
    """
    B, latent_dim = z.shape
    h1 = params["w1"].shape[1]
    h2 = params["w2"].shape[1]
    out_dim = params["w3"].shape[1]
    out_dtype = z.dtype if out_dtype is None else out_dtype

    # Pad only the batch (sublane) axis; no transposes of z or the output.
    b_pad = ((B + 7) // 8) * 8
    if batch_tile is None:
        batch_tile = _choose_batch_tile(b_pad)
    assert batch_tile % 8 == 0, "batch_tile must be a multiple of 8 (sublanes)"
    b_pad = ((b_pad + batch_tile - 1) // batch_tile) * batch_tile
    z_in = jnp.pad(z, ((0, b_pad - B), (0, 0))) if b_pad != B else z

    # Weights are tiny; cast once on the host to the MXU operand dtype.
    w1 = params["w1"].astype(compute_dtype)
    w2 = params["w2"].astype(compute_dtype)
    w3 = params["w3"].astype(compute_dtype)
    b1 = params["b1"].astype(jnp.float32)
    b2 = params["b2"].astype(jnp.float32)
    b3 = params["b3"].astype(jnp.float32)

    grid = (b_pad // batch_tile,)

    in_specs = [
        pl.BlockSpec((batch_tile, latent_dim), lambda i: (i, 0)),  # z tile
        pl.BlockSpec((latent_dim, h1), lambda i: (0, 0)),          # w1 (resident)
        pl.BlockSpec((1, h1), lambda i: (0, 0)),                   # b1
        pl.BlockSpec((h1, h2), lambda i: (0, 0)),                  # w2
        pl.BlockSpec((1, h2), lambda i: (0, 0)),                   # b2
        pl.BlockSpec((h2, out_dim), lambda i: (0, 0)),             # w3
        pl.BlockSpec((1, out_dim), lambda i: (0, 0)),              # b3
    ]
    out_spec = pl.BlockSpec((batch_tile, out_dim), lambda i: (i, 0))

    c_item = jnp.dtype(compute_dtype).itemsize
    flops = 2 * b_pad * (latent_dim * h1 + h1 * h2 + h2 * out_dim)
    bytes_accessed = (
        b_pad * latent_dim * z_in.dtype.itemsize                   # z
        + b_pad * out_dim * jnp.dtype(out_dtype).itemsize          # output
        + (latent_dim * h1 + h1 * h2 + h2 * out_dim) * c_item      # weights
        + (h1 + h2 + out_dim) * 4                                  # biases
    )

    # CORE_PARALLEL actually splits the batch grid across v7x's two
    # TensorCores; plain "parallel" is the safe default on all generations.
    dim_sem = (pltpu.CORE_PARALLEL,) if core_parallel else ("parallel",)

    kernel = functools.partial(decoder_kernel, precision=precision)

    out_padded = pl.pallas_call(
        kernel,
        out_shape=jax.ShapeDtypeStruct((b_pad, out_dim), out_dtype),
        grid_spec=pltpu.PrefetchScalarGridSpec(
            num_scalar_prefetch=0,
            grid=grid,
            in_specs=in_specs,
            out_specs=out_spec,
        ),
        compiler_params=pltpu.CompilerParams(
            dimension_semantics=dim_sem,
            vmem_limit_bytes=32 * 1024 * 1024,
        ),
        cost_estimate=pl.CostEstimate(
            flops=flops, transcendentals=0, bytes_accessed=bytes_accessed),
    )(z_in, w1, b1, w2, b2, w3, b3)

    return out_padded[:B]


def init_decoder_params(key, latent_dim, output_dim, dtype=jnp.float32):
    """Deterministic init mirroring nn.Linear(latent,64)/(64,128)/(128,out).

    Weights stored [in, out] (pre-transposed once on the host so every in-kernel
    dot is a native [M,K]x[K,N] MXU matmul); biases stored [1, out].
    """
    dims = [(latent_dim, 64), (64, 128), (128, output_dim)]
    params = {}
    for idx, (fan_in, fan_out) in enumerate(dims, start=1):
        key, kw, kb = jax.random.split(key, 3)
        bound = 1.0 / (fan_in ** 0.5)  # PyTorch default uniform bound
        params[f"w{idx}"] = jax.random.uniform(
            kw, (fan_in, fan_out), dtype, minval=-bound, maxval=bound)
        params[f"b{idx}"] = jax.random.uniform(
            kb, (1, fan_out), dtype, minval=-bound, maxval=bound)
    return params


def decoder_reference(z, params):
    """Plain-JAX reference for correctness checking."""
    h = jnp.maximum(z @ params["w1"] + params["b1"], 0.0)
    h = jnp.maximum(h @ params["w2"] + params["b2"], 0.0)
    return h @ params["w3"] + params["b3"]


if __name__ == "__main__":
    key = jax.random.PRNGKey(0)
    k_param, k_z, k_z2 = jax.random.split(key, 3)

    latent_dim = 16
    output_dim = 32
    params = init_decoder_params(k_param, latent_dim, output_dim)

    # Case 1: default bf16 MXU operands, f32 accumulation (single grid step).
    B = 256
    z = jax.random.normal(k_z, (B, latent_dim), dtype=jnp.float32)
    ref = decoder_reference(z, params)
    out = jax.block_until_ready(decoder_forward(z, params))
    assert out.shape == (B, output_dim), out.shape
    assert jnp.allclose(out, ref, atol=3e-2, rtol=3e-2), "bf16 mismatch vs reference"

    # Case 2: f32 operand path for tighter accuracy.
    out_f32 = jax.block_until_ready(
        decoder_forward(z, params, compute_dtype=jnp.float32))
    assert jnp.allclose(out_f32, ref, atol=2e-3, rtol=2e-3), "f32 mismatch vs reference"

    # Case 3: ragged batch exercises the sublane-padding path.
    B2 = 200
    z2 = jax.random.normal(k_z2, (B2, latent_dim), dtype=jnp.float32)
    out2 = jax.block_until_ready(decoder_forward(z2, params))
    ref2 = decoder_reference(z2, params)
    assert out2.shape == (B2, output_dim), out2.shape
    assert jnp.allclose(out2, ref2, atol=3e-2, rtol=3e-2), "padded-batch mismatch"

    print("KERNEL_OK")
</pallas_src>

<mosaic_0001>
module attributes {stable_mosaic.version = 11 : i64} {
  func.func @decoder_kernel(%arg0: i32, %arg1: memref<256x16xf32, #tpu.memory_space<vmem>>, %arg2: memref<16x64xbf16, #tpu.memory_space<vmem>>, %arg3: memref<1x64xf32, #tpu.memory_space<vmem>>, %arg4: memref<64x128xbf16, #tpu.memory_space<vmem>>, %arg5: memref<1x128xf32, #tpu.memory_space<vmem>>, %arg6: memref<128x32xbf16, #tpu.memory_space<vmem>>, %arg7: memref<1x32xf32, #tpu.memory_space<vmem>>, %arg8: memref<256x32xf32, #tpu.memory_space<vmem>>) attributes {dimension_semantics = [#tpu.dimension_semantics<parallel>], iteration_bounds = array<i64: 1>, scalar_prefetch = 0 : i64, scratch_operands = 0 : i64, tpu.core_type = #tpu.core_type<tc>, window_params = [{transform_indices = @transform_0, window_bounds = array<i64: 256, 16>}, {pipeline_mode = #tpu.pipeline_mode<synchronous>, transform_indices = @transform_1, window_bounds = array<i64: 16, 64>}, {pipeline_mode = #tpu.pipeline_mode<synchronous>, transform_indices = @transform_2, window_bounds = array<i64: 1, 64>}, {pipeline_mode = #tpu.pipeline_mode<synchronous>, transform_indices = @transform_3, window_bounds = array<i64: 64, 128>}, {pipeline_mode = #tpu.pipeline_mode<synchronous>, transform_indices = @transform_4, window_bounds = array<i64: 1, 128>}, {pipeline_mode = #tpu.pipeline_mode<synchronous>, transform_indices = @transform_5, window_bounds = array<i64: 128, 32>}, {pipeline_mode = #tpu.pipeline_mode<synchronous>, transform_indices = @transform_6, window_bounds = array<i64: 1, 32>}, {transform_indices = @transform_7, window_bounds = array<i64: 256, 32>}]} {
    %c0 = arith.constant 0 : index
    %c0_0 = arith.constant 0 : index
    %0 = vector.load %arg1[%c0, %c0_0] : memref<256x16xf32, #tpu.memory_space<vmem>>, vector<256x16xf32>
    %1 = arith.truncf %0 : vector<256x16xf32> to vector<256x16xbf16>
    %c0_1 = arith.constant 0 : index
    %c0_2 = arith.constant 0 : index
    %2 = vector.load %arg2[%c0_1, %c0_2] : memref<16x64xbf16, #tpu.memory_space<vmem>>, vector<16x64xbf16>
    %cst = arith.constant dense<0.000000e+00> : vector<256x64xf32>
    %3 = tpu.matmul %1, %2, %cst {dimension_numbers = #tpu.dot_dimension_numbers<[1], [0], [0], [1], [0, 0, 1, 1], [], []>} : vector<256x16xbf16>, vector<16x64xbf16>, vector<256x64xf32> -> vector<256x64xf32>
    %c0_3 = arith.constant 0 : index
    %c0_4 = arith.constant 0 : index
    %4 = vector.load %arg3[%c0_3, %c0_4] : memref<1x64xf32, #tpu.memory_space<vmem>>, vector<1x64xf32>
    %5 = vector.broadcast %4 : vector<1x64xf32> to vector<256x64xf32>
    %6 = arith.addf %3, %5 : vector<256x64xf32>
    %cst_5 = arith.constant 0.000000e+00 : f32
    %7 = vector.broadcast %cst_5 : f32 to vector<256x64xf32>
    %8 = arith.maximumf %6, %7 : vector<256x64xf32>
    %9 = arith.truncf %8 : vector<256x64xf32> to vector<256x64xbf16>
    %c0_6 = arith.constant 0 : index
    %c0_7 = arith.constant 0 : index
    %10 = vector.load %arg4[%c0_6, %c0_7] : memref<64x128xbf16, #tpu.memory_space<vmem>>, vector<64x128xbf16>
    %cst_8 = arith.constant dense<0.000000e+00> : vector<256x128xf32>
    %11 = tpu.matmul %9, %10, %cst_8 {dimension_numbers = #tpu.dot_dimension_numbers<[1], [0], [0], [1], [0, 0, 1, 1], [], []>} : vector<256x64xbf16>, vector<64x128xbf16>, vector<256x128xf32> -> vector<256x128xf32>
    %c0_9 = arith.constant 0 : index
    %c0_10 = arith.constant 0 : index
    %12 = vector.load %arg5[%c0_9, %c0_10] : memref<1x128xf32, #tpu.memory_space<vmem>>, vector<1x128xf32>
    %13 = vector.broadcast %12 : vector<1x128xf32> to vector<256x128xf32>
    %14 = arith.addf %11, %13 : vector<256x128xf32>
    %cst_11 = arith.constant 0.000000e+00 : f32
    %15 = vector.broadcast %cst_11 : f32 to vector<256x128xf32>
    %16 = arith.maximumf %14, %15 : vector<256x128xf32>
    %17 = arith.truncf %16 : vector<256x128xf32> to vector<256x128xbf16>
    %c0_12 = arith.constant 0 : index
    %c0_13 = arith.constant 0 : index
    %18 = vector.load %arg6[%c0_12, %c0_13] : memref<128x32xbf16, #tpu.memory_space<vmem>>, vector<128x32xbf16>
    %cst_14 = arith.constant dense<0.000000e+00> : vector<256x32xf32>
    %19 = tpu.matmul %17, %18, %cst_14 {dimension_numbers = #tpu.dot_dimension_numbers<[1], [0], [0], [1], [0, 0, 1, 1], [], []>} : vector<256x128xbf16>, vector<128x32xbf16>, vector<256x32xf32> -> vector<256x32xf32>
    %c0_15 = arith.constant 0 : index
    %c0_16 = arith.constant 0 : index
    %20 = vector.load %arg7[%c0_15, %c0_16] : memref<1x32xf32, #tpu.memory_space<vmem>>, vector<1x32xf32>
    %21 = vector.broadcast %20 : vector<1x32xf32> to vector<256x32xf32>
    %22 = arith.addf %19, %21 : vector<256x32xf32>
    %c0_17 = arith.constant 0 : index
    %c0_18 = arith.constant 0 : index
    %23 = vector.load %arg8[%c0_17, %c0_18] : memref<256x32xf32, #tpu.memory_space<vmem>>, vector<256x32xf32>
    tpu.vector_store %arg8[%c0_17, %c0_18], %22 {strides = array<i32>} : memref<256x32xf32, #tpu.memory_space<vmem>>, vector<256x32xf32>,
    return
  }
  func.func @transform_0(%arg0: i32) -> (i32, i32) {
    %c0_i32 = arith.constant 0 : i32
    %c0_i32_0 = arith.constant 0 : i32
    return %arg0, %c0_i32 : i32, i32
  }
  func.func @transform_1(%arg0: i32) -> (i32, i32) {
    %c0_i32 = arith.constant 0 : i32
    %c0_i32_0 = arith.constant 0 : i32
    %c0_i32_1 = arith.constant 0 : i32
    return %c0_i32, %c0_i32_0 : i32, i32
  }
  func.func @transform_2(%arg0: i32) -> (i32, i32) {
    %c0_i32 = arith.constant 0 : i32
    %c0_i32_0 = arith.constant 0 : i32
    %c0_i32_1 = arith.constant 0 : i32
    return %c0_i32, %c0_i32_0 : i32, i32
  }
  func.func @transform_3(%arg0: i32) -> (i32, i32) {
    %c0_i32 = arith.constant 0 : i32
    %c0_i32_0 = arith.constant 0 : i32
    %c0_i32_1 = arith.constant 0 : i32
    return %c0_i32, %c0_i32_0 : i32, i32
  }
  func.func @transform_4(%arg0: i32) -> (i32, i32) {
    %c0_i32 = arith.constant 0 : i32
    %c0_i32_0 = arith.constant 0 : i32
    %c0_i32_1 = arith.constant 0 : i32
    return %c0_i32, %c0_i32_0 : i32, i32
  }
  func.func @transform_5(%arg0: i32) -> (i32, i32) {
    %c0_i32 = arith.constant 0 : i32
    %c0_i32_0 = arith.constant 0 : i32
    %c0_i32_1 = arith.constant 0 : i32
    return %c0_i32, %c0_i32_0 : i32, i32
  }
  func.func @transform_6(%arg0: i32) -> (i32, i32) {
    %c0_i32 = arith.constant 0 : i32
    %c0_i32_0 = arith.constant 0 : i32
    %c0_i32_1 = arith.constant 0 : i32
    return %c0_i32, %c0_i32_0 : i32, i32
  }
  func.func @transform_7(%arg0: i32) -> (i32, i32) {
    %c0_i32 = arith.constant 0 : i32
    %c0_i32_0 = arith.constant 0 : i32
    return %arg0, %c0_i32 : i32, i32
  }
}

</mosaic_0001>

<llo_original>
// kernel: tpu_custom_call.1
$region0: #{tpu_custom_call.1}
  #allocation0 [shape = 'u32[]', space=smem, size = 0x4, offset = 0x4, fixed_abs, tag = 'smem constant byte address 0x4 - core index']
  #allocation1 [shape = 'u32[144,128]{1,0:T(1,128)}', space=vmem, size = 0x12000, scoped, tag = 'internal scratch']
  %s0 = inlined_call_operand.vmem [shape: f32[256,16], index: 0, kind: input, shape index: {}]
  %s1 = inlined_call_operand.vmem [shape: bf16[16,64], index: 1, kind: input, shape index: {}]
  %s2 = inlined_call_operand.vmem [shape: f32[1,64], index: 2, kind: input, shape index: {}]
  %s3 = inlined_call_operand.vmem [shape: bf16[64,128], index: 3, kind: input, shape index: {}]
  %s4 = inlined_call_operand.vmem [shape: f32[1,128], index: 4, kind: input, shape index: {}]
  %s5 = inlined_call_operand.vmem [shape: bf16[128,32], index: 5, kind: input, shape index: {}]
  %s6 = inlined_call_operand.vmem [shape: f32[1,32], index: 6, kind: input, shape index: {}]
  %s7 = inlined_call_operand.vmem [shape: f32[256,32], index: 7, kind: output, shape index: {}]
  %s8 = sld [smem:[#allocation0]]
  $region38: #{tpu_custom_call.1} parent=0
    _
  %s10 = ssub.s32 1, %s8
  %s11 = scalar_select 0, %s10, %s8
  // Predicated region
  $region2: #{tpu_custom_call.1} parent=0 // pred_check
    _
  $region3: #{tpu_custom_call.1} parent=0 // pred_check_branch
    %13 = sbr.rel (0) target = $region5
  $region4: #{tpu_custom_call.1} parent=0 // pred_region
    _
  $region5: #{tpu_custom_call.1} parent=0 // pred_fallthru
    _
  // Predicated region
  $region6: #{tpu_custom_call.1} parent=0 // pred_check
    _
  $region7: #{tpu_custom_call.1} parent=0 // pred_check_branch
    %15 = sbr.rel (0) target = $region9
  $region8: #{tpu_custom_call.1} parent=0 // pred_region
    _
  $region9: #{tpu_custom_call.1} parent=0 // pred_fallthru
    _
  // Predicated region
  $region10: #{tpu_custom_call.1} parent=0 // pred_check
    _
  $region11: #{tpu_custom_call.1} parent=0 // pred_check_branch
    %17 = sbr.rel (0) target = $region13
  $region12: #{tpu_custom_call.1} parent=0 // pred_region
    _
  $region13: #{tpu_custom_call.1} parent=0 // pred_fallthru
    _
  // Predicated region
  $region14: #{tpu_custom_call.1} parent=0 // pred_check
    _
  $region15: #{tpu_custom_call.1} parent=0 // pred_check_branch
    %19 = sbr.rel (0) target = $region17
  $region16: #{tpu_custom_call.1} parent=0 // pred_region
    _
  $region17: #{tpu_custom_call.1} parent=0 // pred_fallthru
    _
  // Predicated region
  $region18: #{tpu_custom_call.1} parent=0 // pred_check
    _
  $region19: #{tpu_custom_call.1} parent=0 // pred_check_branch
    %21 = sbr.rel (0) target = $region21
  $region20: #{tpu_custom_call.1} parent=0 // pred_region
    _
  $region21: #{tpu_custom_call.1} parent=0 // pred_fallthru
    _
  // Predicated region
  $region22: #{tpu_custom_call.1} parent=0 // pred_check
    _
  $region23: #{tpu_custom_call.1} parent=0 // pred_check_branch
    %23 = sbr.rel (0) target = $region25
  $region24: #{tpu_custom_call.1} parent=0 // pred_region
    _
  $region25: #{tpu_custom_call.1} parent=0 // pred_fallthru
    _
  // Predicated region
  $region26: #{tpu_custom_call.1} parent=0 // pred_check
    _
  $region27: #{tpu_custom_call.1} parent=0 // pred_check_branch
    %25 = sbr.rel (0) target = $region29
  $region28: #{tpu_custom_call.1} parent=0 // pred_region
    _
  $region29: #{tpu_custom_call.1} parent=0 // pred_fallthru
    _
  %v27 = vld [vmem:[%s0] sm:$0xff]
  %v28 = vld [vmem:[%s0 + $0x8] sm:$0xff]
  %v29 = vld [vmem:[%s0 + $0x10] sm:$0xff]
  %v30 = vld [vmem:[%s0 + $0x18] sm:$0xff]
  %v31 = vld [vmem:[%s0 + $0x20] sm:$0xff]
  %v32 = vld [vmem:[%s0 + $0x28] sm:$0xff]
  %v33 = vld [vmem:[%s0 + $0x30] sm:$0xff]
  %v34 = vld [vmem:[%s0 + $0x38] sm:$0xff]
  %v35 = vld [vmem:[%s0 + $0x40] sm:$0xff]
  %v36 = vld [vmem:[%s0 + $0x48] sm:$0xff]
  %v37 = vld [vmem:[%s0 + $0x50] sm:$0xff]
  %v38 = vld [vmem:[%s0 + $0x58] sm:$0xff]
  %v39 = vld [vmem:[%s0 + $0x60] sm:$0xff]
  %v40 = vld [vmem:[%s0 + $0x68] sm:$0xff]
  %v41 = vld [vmem:[%s0 + $0x70] sm:$0xff]
  %v42 = vld [vmem:[%s0 + $0x78] sm:$0xff]
  %v43 = vld [vmem:[%s0 + $0x80] sm:$0xff]
  %v44 = vld [vmem:[%s0 + $0x88] sm:$0xff]
  %v45 = vld [vmem:[%s0 + $0x90] sm:$0xff]
  %v46 = vld [vmem:[%s0 + $0x98] sm:$0xff]
  %v47 = vld [vmem:[%s0 + $0xa0] sm:$0xff]
  %v48 = vld [vmem:[%s0 + $0xa8] sm:$0xff]
  %v49 = vld [vmem:[%s0 + $0xb0] sm:$0xff]
  %v50 = vld [vmem:[%s0 + $0xb8] sm:$0xff]
  %v51 = vld [vmem:[%s0 + $0xc0] sm:$0xff]
  %v52 = vld [vmem:[%s0 + $0xc8] sm:$0xff]
  %v53 = vld [vmem:[%s0 + $0xd0] sm:$0xff]
  %v54 = vld [vmem:[%s0 + $0xd8] sm:$0xff]
  %v55 = vld [vmem:[%s0 + $0xe0] sm:$0xff]
  %v56 = vld [vmem:[%s0 + $0xe8] sm:$0xff]
  %v57 = vld [vmem:[%s0 + $0xf0] sm:$0xff]
  %v58 = vld [vmem:[%s0 + $0xf8] sm:$0xff]
  %v59 = vpack.c.bf16 %v28, %v27
  %v60 = vpack.c.bf16 %v30, %v29
  %v61 = vpack.c.bf16 %v32, %v31
  %v62 = vpack.c.bf16 %v34, %v33
  %v63 = vpack.c.bf16 %v36, %v35
  %v64 = vpack.c.bf16 %v38, %v37
  %v65 = vpack.c.bf16 %v40, %v39
  %v66 = vpack.c.bf16 %v42, %v41
  %v67 = vpack.c.bf16 %v44, %v43
  %v68 = vpack.c.bf16 %v46, %v45
  %v69 = vpack.c.bf16 %v48, %v47
  %v70 = vpack.c.bf16 %v50, %v49
  %v71 = vpack.c.bf16 %v52, %v51
  %v72 = vpack.c.bf16 %v54, %v53
  %v73 = vpack.c.bf16 %v56, %v55
  %v74 = vpack.c.bf16 %v58, %v57
  %v75 = vld [vmem:[%s1] sm:$0xf]
  %v76 = vld [vmem:[%s1 + $0x4] sm:$0xf]
  %v77 = vld [vmem:[%s2] sm:$0x1]
  %v79 = vlaneseq
  %v80 = vshrl.u32 %v79, 7
  %v81 = vsub.s32 0, %v80
  %v82 = vrot.slane %v77, %v81
  %v86 = vunpack.c.l.b16 %v75
  %v87 = vunpack.c.l.b16 %v76
  %v88 = vpack.c.b16 %v87, %v86
  %vm90 = vcmask 130048
  %v92 = vsel %vm90, %v59, 0
  %v95 = vsel %vm90, %v60, 0
  %v98 = vsel %vm90, %v61, 0
  %v101 = vsel %vm90, %v62, 0
  %v104 = vsel %vm90, %v63, 0
  %v107 = vsel %vm90, %v64, 0
  %v110 = vsel %vm90, %v65, 0
  %v113 = vsel %vm90, %v66, 0
  %v116 = vsel %vm90, %v67, 0
  %v119 = vsel %vm90, %v68, 0
  %v122 = vsel %vm90, %v69, 0
  %v125 = vsel %vm90, %v70, 0
  %v128 = vsel %vm90, %v71, 0
  %v131 = vsel %vm90, %v72, 0
  %v134 = vsel %vm90, %v73, 0
  %v137 = vsel %vm90, %v74, 0
  %139 = vmatprep.subr.bf16.mxu0 0
  %140 = vmatpush1.bf16.msra.mxu0 0
  %141 = vmatprep.subr.bf16.mxu0 0
  %142 = vmatpush1.bf16.msra.mxu0 0
  %143 = vmatprep.subr.bf16.mxu0 0
  %144 = vmatpush1.bf16.msra.mxu0 0
  %145 = vmatprep.subr.bf16.mxu0 0
  %146 = vmatpush1.bf16.msra.mxu0 0
  %147 = vmatprep.subr.bf16.mxu0 0
  %148 = vmatpush1.bf16.msra.mxu0 0
  %149 = vmatprep.subr.bf16.mxu0 0
  %150 = vmatpush1.bf16.msra.mxu0 0
  %151 = vmatprep.subr.bf16.mxu0 0
  %152 = vmatpush1.bf16.msra.mxu0 0
  %153 = vmatprep.subr.bf16.mxu0 0
  %154 = vmatpush1.bf16.msra.mxu0 %v88
  %155 = vmatprep.subr.bf16.mxu0 0
  %156 = vmatpush2.bf16.msra.mxu0 0
  %157 = vmatprep.subr.bf16.mxu0 0
  %158 = vmatpush2.bf16.msra.mxu0 0
  %159 = vmatprep.subr.bf16.mxu0 0
  %160 = vmatpush2.bf16.msra.mxu0 0
  %161 = vmatprep.subr.bf16.mxu0 0
  %162 = vmatpush2.bf16.msra.mxu0 0
  %163 = vmatprep.subr.bf16.mxu0 0
  %164 = vmatpush2.bf16.msra.mxu0 0
  %165 = vmatprep.subr.bf16.mxu0 0
  %166 = vmatpush2.bf16.msra.mxu0 0
  %167 = vmatprep.subr.bf16.mxu0 0
  %168 = vmatpush2.bf16.msra.mxu0 0
  %169 = vmatprep.subr.bf16.mxu0 0
  %170 = vmatpush2.bf16.msra.mxu0 0
  %171 = vmatprep.mubr.bf16.mxu0 0
  %172 = vmatmul.mubr.bf16.gmra.mxu0 %v92
  %v173 = vpop.f32.mrf.mxu0
  %v174 = vadd.f32 %v82, %v173
  %v175 = vpop.f32.mrf.mxu0
  %v176 = vpop.f32.mrf.mxu0
  %v177 = vadd.f32 %v82, %v176
  %v178 = vpop.f32.mrf.mxu0
  %179 = vmatprep.mubr.bf16.mxu0 0
  %180 = vmatmul.mubr.bf16.gmra.mxu0 %v95
  %v181 = vpop.f32.mrf.mxu0
  %v182 = vadd.f32 %v82, %v181
  %v183 = vpop.f32.mrf.mxu0
  %v184 = vpop.f32.mrf.mxu0
  %v185 = vadd.f32 %v82, %v184
  %v186 = vpop.f32.mrf.mxu0
  %187 = vmatprep.mubr.bf16.mxu0 0
  %188 = vmatmul.mubr.bf16.gmra.mxu0 %v98
  %v189 = vpop.f32.mrf.mxu0
  %v190 = vadd.f32 %v82, %v189
  %v191 = vpop.f32.mrf.mxu0
  %v192 = vpop.f32.mrf.mxu0
  %v193 = vadd.f32 %v82, %v192
  %v194 = vpop.f32.mrf.mxu0
  %195 = vmatprep.mubr.bf16.mxu0 0
  %196 = vmatmul.mubr.bf16.gmra.mxu0 %v101
  %v197 = vpop.f32.mrf.mxu0
  %v198 = vadd.f32 %v82, %v197
  %v199 = vpop.f32.mrf.mxu0
  %v200 = vpop.f32.mrf.mxu0
  %v201 = vadd.f32 %v82, %v200
  %v202 = vpop.f32.mrf.mxu0
  %203 = vmatprep.mubr.bf16.mxu0 0
  %204 = vmatmul.mubr.bf16.gmra.mxu0 %v104
  %v205 = vpop.f32.mrf.mxu0
  %v206 = vadd.f32 %v82, %v205
  %v207 = vpop.f32.mrf.mxu0
  %v208 = vpop.f32.mrf.mxu0
  %v209 = vadd.f32 %v82, %v208
  %v210 = vpop.f32.mrf.mxu0
  %211 = vmatprep.mubr.bf16.mxu0 0
  %212 = vmatmul.mubr.bf16.gmra.mxu0 %v107
  %v213 = vpop.f32.mrf.mxu0
  %v214 = vadd.f32 %v82, %v213
  %v215 = vpop.f32.mrf.mxu0
  %v216 = vpop.f32.mrf.mxu0
  %v217 = vadd.f32 %v82, %v216
  %v218 = vpop.f32.mrf.mxu0
  %219 = vmatprep.mubr.bf16.mxu0 0
  %220 = vmatmul.mubr.bf16.gmra.mxu0 %v110
  %v221 = vpop.f32.mrf.mxu0
  %v222 = vadd.f32 %v82, %v221
  %v223 = vpop.f32.mrf.mxu0
  %v224 = vpop.f32.mrf.mxu0
  %v225 = vadd.f32 %v82, %v224
  %v226 = vpop.f32.mrf.mxu0
  %227 = vmatprep.mubr.bf16.mxu0 0
  %228 = vmatmul.mubr.bf16.gmra.mxu0 %v113
  %v229 = vpop.f32.mrf.mxu0
  %v230 = vadd.f32 %v82, %v229
  %v231 = vpop.f32.mrf.mxu0
  %v232 = vpop.f32.mrf.mxu0
  %v233 = vadd.f32 %v82, %v232
  %v234 = vpop.f32.mrf.mxu0
  %235 = vmatprep.mubr.bf16.mxu0 0
  %236 = vmatmul.mubr.bf16.gmra.mxu0 %v116
  %v237 = vpop.f32.mrf.mxu0
  %v238 = vadd.f32 %v82, %v237
  %v239 = vpop.f32.mrf.mxu0
  %v240 = vpop.f32.mrf.mxu0
  %v241 = vadd.f32 %v82, %v240
  %v242 = vpop.f32.mrf.mxu0
  %243 = vmatprep.mubr.bf16.mxu0 0
  %244 = vmatmul.mubr.bf16.gmra.mxu0 %v119
  %v245 = vpop.f32.mrf.mxu0
  %v246 = vadd.f32 %v82, %v245
  %v247 = vpop.f32.mrf.mxu0
  %v248 = vpop.f32.mrf.mxu0
  %v249 = vadd.f32 %v82, %v248
  %v250 = vpop.f32.mrf.mxu0
  %251 = vmatprep.mubr.bf16.mxu0 0
  %252 = vmatmul.mubr.bf16.gmra.mxu0 %v122
  %v253 = vpop.f32.mrf.mxu0
  %v254 = vadd.f32 %v82, %v253
  %v255 = vpop.f32.mrf.mxu0
  %v256 = vpop.f32.mrf.mxu0
  %v257 = vadd.f32 %v82, %v256
  %v258 = vpop.f32.mrf.mxu0
  %259 = vmatprep.mubr.bf16.mxu0 0
  %260 = vmatmul.mubr.bf16.gmra.mxu0 %v125
  %v261 = vpop.f32.mrf.mxu0
  %v262 = vadd.f32 %v82, %v261
  %v263 = vpop.f32.mrf.mxu0
  %v264 = vpop.f32.mrf.mxu0
  %v265 = vadd.f32 %v82, %v264
  %v266 = vpop.f32.mrf.mxu0
  %267 = vmatprep.mubr.bf16.mxu0 0
  %268 = vmatmul.mubr.bf16.gmra.mxu0 %v128
  %v269 = vpop.f32.mrf.mxu0
  %v270 = vadd.f32 %v82, %v269
  %v271 = vpop.f32.mrf.mxu0
  %v272 = vpop.f32.mrf.mxu0
  %v273 = vadd.f32 %v82, %v272
  %v274 = vpop.f32.mrf.mxu0
  %275 = vmatprep.mubr.bf16.mxu0 0
  %276 = vmatmul.mubr.bf16.gmra.mxu0 %v131
  %v277 = vpop.f32.mrf.mxu0
  %v278 = vadd.f32 %v82, %v277
  %v279 = vpop.f32.mrf.mxu0
  %v280 = vpop.f32.mrf.mxu0
  %v281 = vadd.f32 %v82, %v280
  %v282 = vpop.f32.mrf.mxu0
  %283 = vmatprep.mubr.bf16.mxu0 0
  %284 = vmatmul.mubr.bf16.gmra.mxu0 %v134
  %v285 = vpop.f32.mrf.mxu0
  %v286 = vadd.f32 %v82, %v285
  %v287 = vpop.f32.mrf.mxu0
  %v288 = vpop.f32.mrf.mxu0
  %v289 = vadd.f32 %v82, %v288
  %v290 = vpop.f32.mrf.mxu0
  %291 = vmatprep.mubr.bf16.mxu0 0
  %292 = vmatmul.mubr.bf16.gmra.mxu0 %v137
  %v293 = vpop.f32.mrf.mxu0
  %v294 = vadd.f32 %v82, %v293
  %v295 = vpop.f32.mrf.mxu0
  %v296 = vpop.f32.mrf.mxu0
  %v297 = vadd.f32 %v82, %v296
  %v298 = vpop.f32.mrf.mxu0
  %299 = vdwg.mxu0
  %v300 = vmax.f32 %v174, 0.0
  %v301 = vmax.f32 %v177, 0.0
  %v302 = vmax.f32 %v182, 0.0
  %v303 = vmax.f32 %v185, 0.0
  %v304 = vmax.f32 %v190, 0.0
  %v305 = vmax.f32 %v193, 0.0
  %v306 = vmax.f32 %v198, 0.0
  %v307 = vmax.f32 %v201, 0.0
  %v308 = vmax.f32 %v206, 0.0
  %v309 = vmax.f32 %v209, 0.0
  %v310 = vmax.f32 %v214, 0.0
  %v311 = vmax.f32 %v217, 0.0
  %v312 = vmax.f32 %v222, 0.0
  %v313 = vmax.f32 %v225, 0.0
  %v314 = vmax.f32 %v230, 0.0
  %v315 = vmax.f32 %v233, 0.0
  %v316 = vmax.f32 %v238, 0.0
  %v317 = vmax.f32 %v241, 0.0
  %v318 = vmax.f32 %v246, 0.0
  %v319 = vmax.f32 %v249, 0.0
  %v320 = vmax.f32 %v254, 0.0
  %v321 = vmax.f32 %v257, 0.0
  %v322 = vmax.f32 %v262, 0.0
  %v323 = vmax.f32 %v265, 0.0
  %v324 = vmax.f32 %v270, 0.0
  %v325 = vmax.f32 %v273, 0.0
  %v326 = vmax.f32 %v278, 0.0
  %v327 = vmax.f32 %v281, 0.0
  %v328 = vmax.f32 %v286, 0.0
  %v329 = vmax.f32 %v289, 0.0
  %v330 = vmax.f32 %v294, 0.0
  %v331 = vmax.f32 %v297, 0.0
  %v332 = vpack.c.bf16 %v301, %v300
  %v333 = vpack.c.bf16 %v303, %v302
  %v334 = vpack.c.bf16 %v305, %v304
  %v335 = vpack.c.bf16 %v307, %v306
  %v336 = vpack.c.bf16 %v309, %v308
  %v337 = vpack.c.bf16 %v311, %v310
  %v338 = vpack.c.bf16 %v313, %v312
  %v339 = vpack.c.bf16 %v315, %v314
  %v340 = vpack.c.bf16 %v317, %v316
  %v341 = vpack.c.bf16 %v319, %v318
  %v342 = vpack.c.bf16 %v321, %v320
  %v343 = vpack.c.bf16 %v323, %v322
  %v344 = vpack.c.bf16 %v325, %v324
  %v345 = vpack.c.bf16 %v327, %v326
  %v346 = vpack.c.bf16 %v329, %v328
  %v347 = vpack.c.bf16 %v331, %v330
  %v348 = vld [vmem:[%s3] sm:$0xf]
  %v349 = vld [vmem:[%s3 + $0x4] sm:$0xf]
  %v350 = vld [vmem:[%s3 + $0x8] sm:$0xf]
  %v351 = vld [vmem:[%s3 + $0xc] sm:$0xf]
  %v352 = vld [vmem:[%s3 + $0x10] sm:$0xf]
  %v353 = vld [vmem:[%s3 + $0x14] sm:$0xf]
  %v354 = vld [vmem:[%s3 + $0x18] sm:$0xf]
  %v355 = vld [vmem:[%s3 + $0x1c] sm:$0xf]
  %v356 = vld [vmem:[%s4] sm:$0x1]
  %v358 = vlaneseq
  %v359 = vshrl.u32 %v358, 7
  %v360 = vsub.s32 0, %v359
  %v361 = vrot.slane %v356, %v360
  %v371 = vunpack.c.l.b16 %v348
  %v372 = vunpack.c.l.b16 %v349
  %v373 = vunpack.c.l.b16 %v350
  %v374 = vunpack.c.l.b16 %v351
  %v375 = vunpack.c.l.b16 %v352
  %v376 = vunpack.c.l.b16 %v353
  %v377 = vunpack.c.l.b16 %v354
  %v378 = vunpack.c.l.b16 %v355
  %v379 = vpack.c.b16 %v372, %v371
  %v380 = vpack.c.b16 %v374, %v373
  %v381 = vpack.c.b16 %v376, %v375
  %v382 = vpack.c.b16 %v378, %v377
  %vm387 = vcmask 523264
  %v389 = vsel %vm387, %v332, 0
  %v392 = vsel %vm387, %v333, 0
  %v395 = vsel %vm387, %v334, 0
  %v398 = vsel %vm387, %v335, 0
  %v401 = vsel %vm387, %v336, 0
  %v404 = vsel %vm387, %v337, 0
  %v407 = vsel %vm387, %v338, 0
  %v410 = vsel %vm387, %v339, 0
  %v413 = vsel %vm387, %v340, 0
  %v416 = vsel %vm387, %v341, 0
  %v419 = vsel %vm387, %v342, 0
  %v422 = vsel %vm387, %v343, 0
  %v425 = vsel %vm387, %v344, 0
  %v428 = vsel %vm387, %v345, 0
  %v431 = vsel %vm387, %v346, 0
  %v434 = vsel %vm387, %v347, 0
  %436 = vmatprep.subr.bf16.mxu0 0
  %437 = vmatpush1.bf16.msra.mxu0 0
  %438 = vmatprep.subr.bf16.mxu0 0
  %439 = vmatpush1.bf16.msra.mxu0 0
  %440 = vmatprep.subr.bf16.mxu0 0
  %441 = vmatpush1.bf16.msra.mxu0 0
  %442 = vmatprep.subr.bf16.mxu0 0
  %443 = vmatpush1.bf16.msra.mxu0 0
  %444 = vmatprep.subr.bf16.mxu0 0
  %445 = vmatpush1.bf16.msra.mxu0 %v382
  %446 = vmatprep.subr.bf16.mxu0 0
  %447 = vmatpush1.bf16.msra.mxu0 %v381
  %448 = vmatprep.subr.bf16.mxu0 0
  %449 = vmatpush1.bf16.msra.mxu0 %v380
  %450 = vmatprep.subr.bf16.mxu0 0
  %451 = vmatpush1.bf16.msra.mxu0 %v379
  %452 = vmatprep.subr.bf16.mxu0 0
  %453 = vmatpush2.bf16.msra.mxu0 0
  %454 = vmatprep.subr.bf16.mxu0 0
  %455 = vmatpush2.bf16.msra.mxu0 0
  %456 = vmatprep.subr.bf16.mxu0 0
  %457 = vmatpush2.bf16.msra.mxu0 0
  %458 = vmatprep.subr.bf16.mxu0 0
  %459 = vmatpush2.bf16.msra.mxu0 0
  %460 = vmatprep.subr.bf16.mxu0 0
  %461 = vmatpush2.bf16.msra.mxu0 0
  %462 = vmatprep.subr.bf16.mxu0 0
  %463 = vmatpush2.bf16.msra.mxu0 0
  %464 = vmatprep.subr.bf16.mxu0 0
  %465 = vmatpush2.bf16.msra.mxu0 0
  %466 = vmatprep.subr.bf16.mxu0 0
  %467 = vmatpush2.bf16.msra.mxu0 0
  %468 = vmatprep.mubr.bf16.mxu0 0
  %469 = vmatmul.mubr.bf16.gmra.mxu0 %v389
  %v470 = vpop.f32.mrf.mxu0
  %v471 = vadd.f32 %v361, %v470
  %v472 = vpop.f32.mrf.mxu0
  %v473 = vpop.f32.mrf.mxu0
  %v474 = vadd.f32 %v361, %v473
  %v475 = vpop.f32.mrf.mxu0
  %476 = vmatprep.mubr.bf16.mxu0 0
  %477 = vmatmul.mubr.bf16.gmra.mxu0 %v392
  %v478 = vpop.f32.mrf.mxu0
  %v479 = vadd.f32 %v361, %v478
  %v480 = vpop.f32.mrf.mxu0
  %v481 = vpop.f32.mrf.mxu0
  %v482 = vadd.f32 %v361, %v481
  %v483 = vpop.f32.mrf.mxu0
  %484 = vmatprep.mubr.bf16.mxu0 0
  %485 = vmatmul.mubr.bf16.gmra.mxu0 %v395
  %v486 = vpop.f32.mrf.mxu0
  %v487 = vadd.f32 %v361, %v486
  %v488 = vpop.f32.mrf.mxu0
  %v489 = vpop.f32.mrf.mxu0
  %v490 = vadd.f32 %v361, %v489
  %v491 = vpop.f32.mrf.mxu0
  %492 = vmatprep.mubr.bf16.mxu0 0
  %493 = vmatmul.mubr.bf16.gmra.mxu0 %v398
  %v494 = vpop.f32.mrf.mxu0
  %v495 = vadd.f32 %v361, %v494
  %v496 = vpop.f32.mrf.mxu0
  %v497 = vpop.f32.mrf.mxu0
  %v498 = vadd.f32 %v361, %v497
  %v499 = vpop.f32.mrf.mxu0
  %500 = vmatprep.mubr.bf16.mxu0 0
  %501 = vmatmul.mubr.bf16.gmra.mxu0 %v401
  %v502 = vpop.f32.mrf.mxu0
  %v503 = vadd.f32 %v361, %v502
  %v504 = vpop.f32.mrf.mxu0
  %v505 = vpop.f32.mrf.mxu0
  %v506 = vadd.f32 %v361, %v505
  %v507 = vpop.f32.mrf.mxu0
  %508 = vmatprep.mubr.bf16.mxu0 0
  %509 = vmatmul.mubr.bf16.gmra.mxu0 %v404
  %v510 = vpop.f32.mrf.mxu0
  %v511 = vadd.f32 %v361, %v510
  %v512 = vpop.f32.mrf.mxu0
  %v513 = vpop.f32.mrf.mxu0
  %v514 = vadd.f32 %v361, %v513
  %v515 = vpop.f32.mrf.mxu0
  %516 = vmatprep.mubr.bf16.mxu0 0
  %517 = vmatmul.mubr.bf16.gmra.mxu0 %v407
  %v518 = vpop.f32.mrf.mxu0
  %v519 = vadd.f32 %v361, %v518
  %v520 = vpop.f32.mrf.mxu0
  %v521 = vpop.f32.mrf.mxu0
  %v522 = vadd.f32 %v361, %v521
  %v523 = vpop.f32.mrf.mxu0
  %524 = vmatprep.mubr.bf16.mxu0 0
  %525 = vmatmul.mubr.bf16.gmra.mxu0 %v410
  %v526 = vpop.f32.mrf.mxu0
  %v527 = vadd.f32 %v361, %v526
  %v528 = vpop.f32.mrf.mxu0
  %v529 = vpop.f32.mrf.mxu0
  %v530 = vadd.f32 %v361, %v529
  %v531 = vpop.f32.mrf.mxu0
  %532 = vmatprep.mubr.bf16.mxu0 0
  %533 = vmatmul.mubr.bf16.gmra.mxu0 %v413
  %v534 = vpop.f32.mrf.mxu0
  %v535 = vadd.f32 %v361, %v534
  %v536 = vpop.f32.mrf.mxu0
  %v537 = vpop.f32.mrf.mxu0
  %v538 = vadd.f32 %v361, %v537
  %v539 = vpop.f32.mrf.mxu0
  %540 = vmatprep.mubr.bf16.mxu0 0
  %541 = vmatmul.mubr.bf16.gmra.mxu0 %v416
  %v542 = vpop.f32.mrf.mxu0
  %v543 = vadd.f32 %v361, %v542
  %v544 = vpop.f32.mrf.mxu0
  %v545 = vpop.f32.mrf.mxu0
  %v546 = vadd.f32 %v361, %v545
  %v547 = vpop.f32.mrf.mxu0
  %548 = vmatprep.mubr.bf16.mxu0 0
  %549 = vmatmul.mubr.bf16.gmra.mxu0 %v419
  %v550 = vpop.f32.mrf.mxu0
  %v551 = vadd.f32 %v361, %v550
  %v552 = vpop.f32.mrf.mxu0
  %v553 = vpop.f32.mrf.mxu0
  %v554 = vadd.f32 %v361, %v553
  %v555 = vpop.f32.mrf.mxu0
  %556 = vmatprep.mubr.bf16.mxu0 0
  %557 = vmatmul.mubr.bf16.gmra.mxu0 %v422
  %v558 = vpop.f32.mrf.mxu0
  %v559 = vadd.f32 %v361, %v558
  %v560 = vpop.f32.mrf.mxu0
  %v561 = vpop.f32.mrf.mxu0
  %v562 = vadd.f32 %v361, %v561
  %v563 = vpop.f32.mrf.mxu0
  %564 = vmatprep.mubr.bf16.mxu0 0
  %565 = vmatmul.mubr.bf16.gmra.mxu0 %v425
  %v566 = vpop.f32.mrf.mxu0
  %v567 = vadd.f32 %v361, %v566
  %v568 = vpop.f32.mrf.mxu0
  %v569 = vpop.f32.mrf.mxu0
  %v570 = vadd.f32 %v361, %v569
  %v571 = vpop.f32.mrf.mxu0
  %572 = vmatprep.mubr.bf16.mxu0 0
  %573 = vmatmul.mubr.bf16.gmra.mxu0 %v428
  %v574 = vpop.f32.mrf.mxu0
  %v575 = vadd.f32 %v361, %v574
  %v576 = vpop.f32.mrf.mxu0
  %v577 = vpop.f32.mrf.mxu0
  %v578 = vadd.f32 %v361, %v577
  %v579 = vpop.f32.mrf.mxu0
  %580 = vmatprep.mubr.bf16.mxu0 0
  %581 = vmatmul.mubr.bf16.gmra.mxu0 %v431
  %v582 = vpop.f32.mrf.mxu0
  %v583 = vadd.f32 %v361, %v582
  %v584 = vpop.f32.mrf.mxu0
  %v585 = vpop.f32.mrf.mxu0
  %v586 = vadd.f32 %v361, %v585
  %v587 = vpop.f32.mrf.mxu0
  %588 = vmatprep.mubr.bf16.mxu0 0
  %589 = vmatmul.mubr.bf16.gmra.mxu0 %v434
  %v590 = vpop.f32.mrf.mxu0
  %v591 = vadd.f32 %v361, %v590
  %v592 = vpop.f32.mrf.mxu0
  %v593 = vpop.f32.mrf.mxu0
  %v594 = vadd.f32 %v361, %v593
  %v595 = vpop.f32.mrf.mxu0
  %596 = vdwg.mxu0
  %v597 = vmax.f32 %v471, 0.0
  %v598 = vmax.f32 %v474, 0.0
  %v599 = vmax.f32 %v479, 0.0
  %v600 = vmax.f32 %v482, 0.0
  %v601 = vmax.f32 %v487, 0.0
  %v602 = vmax.f32 %v490, 0.0
  %v603 = vmax.f32 %v495, 0.0
  %v604 = vmax.f32 %v498, 0.0
  %v605 = vmax.f32 %v503, 0.0
  %v606 = vmax.f32 %v506, 0.0
  %v607 = vmax.f32 %v511, 0.0
  %v608 = vmax.f32 %v514, 0.0
  %v609 = vmax.f32 %v519, 0.0
  %v610 = vmax.f32 %v522, 0.0
  %v611 = vmax.f32 %v527, 0.0
  %v612 = vmax.f32 %v530, 0.0
  %v613 = vmax.f32 %v535, 0.0
  %v614 = vmax.f32 %v538, 0.0
  %v615 = vmax.f32 %v543, 0.0
  %v616 = vmax.f32 %v546, 0.0
  %v617 = vmax.f32 %v551, 0.0
  %v618 = vmax.f32 %v554, 0.0
  %v619 = vmax.f32 %v559, 0.0
  %v620 = vmax.f32 %v562, 0.0
  %v621 = vmax.f32 %v567, 0.0
  %v622 = vmax.f32 %v570, 0.0
  %v623 = vmax.f32 %v575, 0.0
  %v624 = vmax.f32 %v578, 0.0
  %v625 = vmax.f32 %v583, 0.0
  %v626 = vmax.f32 %v586, 0.0
  %v627 = vmax.f32 %v591, 0.0
  %v628 = vmax.f32 %v594, 0.0
  %v629 = vpack.c.bf16 %v598, %v597
  %v630 = vpack.c.bf16 %v600, %v599
  %v631 = vpack.c.bf16 %v602, %v601
  %v632 = vpack.c.bf16 %v604, %v603
  %v633 = vpack.c.bf16 %v606, %v605
  %v634 = vpack.c.bf16 %v608, %v607
  %v635 = vpack.c.bf16 %v610, %v609
  %v636 = vpack.c.bf16 %v612, %v611
  %v637 = vpack.c.bf16 %v614, %v613
  %v638 = vpack.c.bf16 %v616, %v615
  %v639 = vpack.c.bf16 %v618, %v617
  %v640 = vpack.c.bf16 %v620, %v619
  %v641 = vpack.c.bf16 %v622, %v621
  %v642 = vpack.c.bf16 %v624, %v623
  %v643 = vpack.c.bf16 %v626, %v625
  %v644 = vpack.c.bf16 %v628, %v627
  %v645 = vld [vmem:[%s5] sm:$0xf]
  %v646 = vld [vmem:[%s5 + $0x4] sm:$0xf]
  %v647 = vld [vmem:[%s5 + $0x8] sm:$0xf]
  %v648 = vld [vmem:[%s5 + $0xc] sm:$0xf]
  %v649 = vld [vmem:[%s5 + $0x10] sm:$0xf]
  %v650 = vld [vmem:[%s5 + $0x14] sm:$0xf]
  %v651 = vld [vmem:[%s5 + $0x18] sm:$0xf]
  %v652 = vld [vmem:[%s5 + $0x1c] sm:$0xf]
  %v653 = vld [vmem:[%s5 + $0x20] sm:$0xf]
  %v654 = vld [vmem:[%s5 + $0x24] sm:$0xf]
  %v655 = vld [vmem:[%s5 + $0x28] sm:$0xf]
  %v656 = vld [vmem:[%s5 + $0x2c] sm:$0xf]
  %v657 = vld [vmem:[%s5 + $0x30] sm:$0xf]
  %v658 = vld [vmem:[%s5 + $0x34] sm:$0xf]
  %v659 = vld [vmem:[%s5 + $0x38] sm:$0xf]
  %v660 = vld [vmem:[%s5 + $0x3c] sm:$0xf]
  %v661 = vld [vmem:[%s6] sm:$0x1]
  %v663 = vlaneseq
  %v664 = vshrl.u32 %v663, 7
  %v665 = vsub.s32 0, %v664
  %v666 = vrot.slane %v661, %v665
  %v684 = vunpack.c.l.b16 %v645
  %v685 = vunpack.c.l.b16 %v646
  %v686 = vunpack.c.l.b16 %v647
  %v687 = vunpack.c.l.b16 %v648
  %v688 = vunpack.c.l.b16 %v649
  %v689 = vunpack.c.l.b16 %v650
  %v690 = vunpack.c.l.b16 %v651
  %v691 = vunpack.c.l.b16 %v652
  %v692 = vunpack.c.l.b16 %v653
  %v693 = vunpack.c.l.b16 %v654
  %v694 = vunpack.c.l.b16 %v655
  %v695 = vunpack.c.l.b16 %v656
  %v696 = vunpack.c.l.b16 %v657
  %v697 = vunpack.c.l.b16 %v658
  %v698 = vunpack.c.l.b16 %v659
  %v699 = vunpack.c.l.b16 %v660
  %v700 = vpack.c.b16 %v685, %v684
  %v701 = vpack.c.b16 %v687, %v686
  %v702 = vpack.c.b16 %v689, %v688
  %v703 = vpack.c.b16 %v691, %v690
  %v704 = vpack.c.b16 %v693, %v692
  %v705 = vpack.c.b16 %v695, %v694
  %v706 = vpack.c.b16 %v697, %v696
  %v707 = vpack.c.b16 %v699, %v698
  %716 = vmatprep.subr.bf16.mxu0 0
  %717 = vmatpush1.bf16.msra.mxu0 %v707
  %718 = vmatprep.subr.bf16.mxu0 0
  %719 = vmatpush1.bf16.msra.mxu0 %v706
  %720 = vmatprep.subr.bf16.mxu0 0
  %721 = vmatpush1.bf16.msra.mxu0 %v705
  %722 = vmatprep.subr.bf16.mxu0 0
  %723 = vmatpush1.bf16.msra.mxu0 %v704
  %724 = vmatprep.subr.bf16.mxu0 0
  %725 = vmatpush1.bf16.msra.mxu0 %v703
  %726 = vmatprep.subr.bf16.mxu0 0
  %727 = vmatpush1.bf16.msra.mxu0 %v702
  %728 = vmatprep.subr.bf16.mxu0 0
  %729 = vmatpush1.bf16.msra.mxu0 %v701
  %730 = vmatprep.subr.bf16.mxu0 0
  %731 = vmatpush1.bf16.msra.mxu0 %v700
  %732 = vmatprep.subr.bf16.mxu0 0
  %733 = vmatpush2.bf16.msra.mxu0 0
  %734 = vmatprep.subr.bf16.mxu0 0
  %735 = vmatpush2.bf16.msra.mxu0 0
  %736 = vmatprep.subr.bf16.mxu0 0
  %737 = vmatpush2.bf16.msra.mxu0 0
  %738 = vmatprep.subr.bf16.mxu0 0
  %739 = vmatpush2.bf16.msra.mxu0 0
  %740 = vmatprep.subr.bf16.mxu0 0
  %741 = vmatpush2.bf16.msra.mxu0 0
  %742 = vmatprep.subr.bf16.mxu0 0
  %743 = vmatpush2.bf16.msra.mxu0 0
  %744 = vmatprep.subr.bf16.mxu0 0
  %745 = vmatpush2.bf16.msra.mxu0 0
  %746 = vmatprep.subr.bf16.mxu0 0
  %747 = vmatpush2.bf16.msra.mxu0 0
  %748 = vmatprep.mubr.bf16.mxu0 0
  %749 = vmatmul.mubr.bf16.gmra.mxu0 %v629
  %v750 = vpop.f32.mrf.mxu0
  %v751 = vadd.f32 %v666, %v750
  %v752 = vpop.f32.mrf.mxu0
  %v753 = vpop.f32.mrf.mxu0
  %v754 = vadd.f32 %v666, %v753
  %v755 = vpop.f32.mrf.mxu0
  %756 = vmatprep.mubr.bf16.mxu0 0
  %757 = vmatmul.mubr.bf16.gmra.mxu0 %v630
  %v758 = vpop.f32.mrf.mxu0
  %v759 = vadd.f32 %v666, %v758
  %v760 = vpop.f32.mrf.mxu0
  %v761 = vpop.f32.mrf.mxu0
  %v762 = vadd.f32 %v666, %v761
  %v763 = vpop.f32.mrf.mxu0
  %764 = vmatprep.mubr.bf16.mxu0 0
  %765 = vmatmul.mubr.bf16.gmra.mxu0 %v631
  %v766 = vpop.f32.mrf.mxu0
  %v767 = vadd.f32 %v666, %v766
  %v768 = vpop.f32.mrf.mxu0
  %v769 = vpop.f32.mrf.mxu0
  %v770 = vadd.f32 %v666, %v769
  %v771 = vpop.f32.mrf.mxu0
  %772 = vmatprep.mubr.bf16.mxu0 0
  %773 = vmatmul.mubr.bf16.gmra.mxu0 %v632
  %v774 = vpop.f32.mrf.mxu0
  %v775 = vadd.f32 %v666, %v774
  %v776 = vpop.f32.mrf.mxu0
  %v777 = vpop.f32.mrf.mxu0
  %v778 = vadd.f32 %v666, %v777
  %v779 = vpop.f32.mrf.mxu0
  %780 = vmatprep.mubr.bf16.mxu0 0
  %781 = vmatmul.mubr.bf16.gmra.mxu0 %v633
  %v782 = vpop.f32.mrf.mxu0
  %v783 = vadd.f32 %v666, %v782
  %v784 = vpop.f32.mrf.mxu0
  %v785 = vpop.f32.mrf.mxu0
  %v786 = vadd.f32 %v666, %v785
  %v787 = vpop.f32.mrf.mxu0
  %788 = vmatprep.mubr.bf16.mxu0 0
  %789 = vmatmul.mubr.bf16.gmra.mxu0 %v634
  %v790 = vpop.f32.mrf.mxu0
  %v791 = vadd.f32 %v666, %v790
  %v792 = vpop.f32.mrf.mxu0
  %v793 = vpop.f32.mrf.mxu0
  %v794 = vadd.f32 %v666, %v793
  %v795 = vpop.f32.mrf.mxu0
  %796 = vmatprep.mubr.bf16.mxu0 0
  %797 = vmatmul.mubr.bf16.gmra.mxu0 %v635
  %v798 = vpop.f32.mrf.mxu0
  %v799 = vadd.f32 %v666, %v798
  %v800 = vpop.f32.mrf.mxu0
  %v801 = vpop.f32.mrf.mxu0
  %v802 = vadd.f32 %v666, %v801
  %v803 = vpop.f32.mrf.mxu0
  %804 = vmatprep.mubr.bf16.mxu0 0
  %805 = vmatmul.mubr.bf16.gmra.mxu0 %v636
  %v806 = vpop.f32.mrf.mxu0
  %v807 = vadd.f32 %v666, %v806
  %v808 = vpop.f32.mrf.mxu0
  %v809 = vpop.f32.mrf.mxu0
  %v810 = vadd.f32 %v666, %v809
  %v811 = vpop.f32.mrf.mxu0
  %812 = vmatprep.mubr.bf16.mxu0 0
  %813 = vmatmul.mubr.bf16.gmra.mxu0 %v637
  %v814 = vpop.f32.mrf.mxu0
  %v815 = vadd.f32 %v666, %v814
  %v816 = vpop.f32.mrf.mxu0
  %v817 = vpop.f32.mrf.mxu0
  %v818 = vadd.f32 %v666, %v817
  %v819 = vpop.f32.mrf.mxu0
  %820 = vmatprep.mubr.bf16.mxu0 0
  %821 = vmatmul.mubr.bf16.gmra.mxu0 %v638
  %v822 = vpop.f32.mrf.mxu0
  %v823 = vadd.f32 %v666, %v822
  %v824 = vpop.f32.mrf.mxu0
  %v825 = vpop.f32.mrf.mxu0
  %v826 = vadd.f32 %v666, %v825
  %v827 = vpop.f32.mrf.mxu0
  %828 = vmatprep.mubr.bf16.mxu0 0
  %829 = vmatmul.mubr.bf16.gmra.mxu0 %v639
  %v830 = vpop.f32.mrf.mxu0
  %v831 = vadd.f32 %v666, %v830
  %v832 = vpop.f32.mrf.mxu0
  %v833 = vpop.f32.mrf.mxu0
  %v834 = vadd.f32 %v666, %v833
  %v835 = vpop.f32.mrf.mxu0
  %836 = vmatprep.mubr.bf16.mxu0 0
  %837 = vmatmul.mubr.bf16.gmra.mxu0 %v640
  %v838 = vpop.f32.mrf.mxu0
  %v839 = vadd.f32 %v666, %v838
  %v840 = vpop.f32.mrf.mxu0
  %v841 = vpop.f32.mrf.mxu0
  %v842 = vadd.f32 %v666, %v841
  %v843 = vpop.f32.mrf.mxu0
  %844 = vmatprep.mubr.bf16.mxu0 0
  %845 = vmatmul.mubr.bf16.gmra.mxu0 %v641
  %v846 = vpop.f32.mrf.mxu0
  %v847 = vadd.f32 %v666, %v846
  %v848 = vpop.f32.mrf.mxu0
  %v849 = vpop.f32.mrf.mxu0
  %v850 = vadd.f32 %v666, %v849
  %v851 = vpop.f32.mrf.mxu0
  %852 = vmatprep.mubr.bf16.mxu0 0
  %853 = vmatmul.mubr.bf16.gmra.mxu0 %v642
  %v854 = vpop.f32.mrf.mxu0
  %v855 = vadd.f32 %v666, %v854
  %v856 = vpop.f32.mrf.mxu0
  %v857 = vpop.f32.mrf.mxu0
  %v858 = vadd.f32 %v666, %v857
  %v859 = vpop.f32.mrf.mxu0
  %860 = vmatprep.mubr.bf16.mxu0 0
  %861 = vmatmul.mubr.bf16.gmra.mxu0 %v643
  %v862 = vpop.f32.mrf.mxu0
  %v863 = vadd.f32 %v666, %v862
  %v864 = vpop.f32.mrf.mxu0
  %v865 = vpop.f32.mrf.mxu0
  %v866 = vadd.f32 %v666, %v865
  %v867 = vpop.f32.mrf.mxu0
  %868 = vmatprep.mubr.bf16.mxu0 0
  %869 = vmatmul.mubr.bf16.gmra.mxu0 %v644
  %v870 = vpop.f32.mrf.mxu0
  %v871 = vadd.f32 %v666, %v870
  %v872 = vpop.f32.mrf.mxu0
  %v873 = vpop.f32.mrf.mxu0
  %v874 = vadd.f32 %v666, %v873
  %v875 = vpop.f32.mrf.mxu0
  %876 = vdwg.mxu0
  %vm877 = vcmask 261120
  %878 = vst.msk [vmem:[%s7] sm:$0xff] %vm877, %v751
  %879 = vst.msk [vmem:[%s7 + $0x8] sm:$0xff] %vm877, %v754
  %880 = vst.msk [vmem:[%s7 + $0x10] sm:$0xff] %vm877, %v759
  %881 = vst.msk [vmem:[%s7 + $0x18] sm:$0xff] %vm877, %v762
  %882 = vst.msk [vmem:[%s7 + $0x20] sm:$0xff] %vm877, %v767
  %883 = vst.msk [vmem:[%s7 + $0x28] sm:$0xff] %vm877, %v770
  %884 = vst.msk [vmem:[%s7 + $0x30] sm:$0xff] %vm877, %v775
  %885 = vst.msk [vmem:[%s7 + $0x38] sm:$0xff] %vm877, %v778
  %886 = vst.msk [vmem:[%s7 + $0x40] sm:$0xff] %vm877, %v783
  %887 = vst.msk [vmem:[%s7 + $0x48] sm:$0xff] %vm877, %v786
  %888 = vst.msk [vmem:[%s7 + $0x50] sm:$0xff] %vm877, %v791
  %889 = vst.msk [vmem:[%s7 + $0x58] sm:$0xff] %vm877, %v794
  %890 = vst.msk [vmem:[%s7 + $0x60] sm:$0xff] %vm877, %v799
  %891 = vst.msk [vmem:[%s7 + $0x68] sm:$0xff] %vm877, %v802
  %892 = vst.msk [vmem:[%s7 + $0x70] sm:$0xff] %vm877, %v807
  %893 = vst.msk [vmem:[%s7 + $0x78] sm:$0xff] %vm877, %v810
  %894 = vst.msk [vmem:[%s7 + $0x80] sm:$0xff] %vm877, %v815
  %895 = vst.msk [vmem:[%s7 + $0x88] sm:$0xff] %vm877, %v818
  %896 = vst.msk [vmem:[%s7 + $0x90] sm:$0xff] %vm877, %v823
  %897 = vst.msk [vmem:[%s7 + $0x98] sm:$0xff] %vm877, %v826
  %898 = vst.msk [vmem:[%s7 + $0xa0] sm:$0xff] %vm877, %v831
  %899 = vst.msk [vmem:[%s7 + $0xa8] sm:$0xff] %vm877, %v834
  %900 = vst.msk [vmem:[%s7 + $0xb0] sm:$0xff] %vm877, %v839
  %901 = vst.msk [vmem:[%s7 + $0xb8] sm:$0xff] %vm877, %v842
  %902 = vst.msk [vmem:[%s7 + $0xc0] sm:$0xff] %vm877, %v847
  %903 = vst.msk [vmem:[%s7 + $0xc8] sm:$0xff] %vm877, %v850
  %904 = vst.msk [vmem:[%s7 + $0xd0] sm:$0xff] %vm877, %v855
  %905 = vst.msk [vmem:[%s7 + $0xd8] sm:$0xff] %vm877, %v858
  %906 = vst.msk [vmem:[%s7 + $0xe0] sm:$0xff] %vm877, %v863
  %907 = vst.msk [vmem:[%s7 + $0xe8] sm:$0xff] %vm877, %v866
  %908 = vst.msk [vmem:[%s7 + $0xf0] sm:$0xff] %vm877, %v871
  %909 = vst.msk [vmem:[%s7 + $0xf8] sm:$0xff] %vm877, %v874
  // Predicated region
  $region30: #{tpu_custom_call.1} parent=0 // pred_check
    _
  $region31: #{tpu_custom_call.1} parent=0 // pred_check_branch
    %911 = sbr.rel (0) target = $region33
  $region32: #{tpu_custom_call.1} parent=0 // pred_region
    _
  $region33: #{tpu_custom_call.1} parent=0 // pred_fallthru
    _
  // Predicated region
  $region34: #{tpu_custom_call.1} parent=0 // pred_check
    _
  $region35: #{tpu_custom_call.1} parent=0 // pred_check_branch
    %913 = sbr.rel (0) target = $region37
  $region36: #{tpu_custom_call.1} parent=0 // pred_region
    _
  $region37: #{tpu_custom_call.1} parent=0 // pred_fallthru
    _

</llo_original>
